<compile_context>
chip_gen: v6e
topology: v6e:2x2x1
jax: 0.10.0
libtpu: 0.0.40
codegen_flags: <defaults>
</compile_context>

<pallas_src>
import functools

import jax
import jax.numpy as jnp
from jax import lax
from jax.experimental import pallas as pl
from jax.experimental.pallas import tpu as pltpu

IN_FEATURES = 768
OUT_FEATURES = 2
PADDED_OUT = 128       # MXU operand width (lane dim); HBM output stays 2 wide
MAX_TILE_B = 2048      # bf16 x tile = 3 MiB -> 6 MiB double-buffered (fits v5e/v7x)


def _round_up(v, m):
    return ((v + m - 1) // m) * m


def _linear_kernel(x_ref, w_ref, b_ref, o_ref):
    # x_ref: (tile_b, 768) bf16   w_ref: (768, 128) bf16   b_ref: (1, 2) f32
    # o_ref: (tile_b, 2)   f32
    acc = lax.dot_general(
        x_ref[...],
        w_ref[...],
        dimension_numbers=(((1,), (0,)), ((), ())),   # (M,K) x (K,N) MXU fast path
        preferred_element_type=jnp.float32,            # f32 accumulation
    )
    # Only the first 2 lanes are real outputs.  The narrow store is masked
    # (vst.msk) but tiny, and it avoids writing a 128-wide padded slab to HBM.
    o_ref[...] = (acc[:, :OUT_FEATURES] + b_ref[...]).astype(o_ref.dtype)


@functools.partial(jax.jit, static_argnames=("max_tile_b",))
def classifier_forward(x, weight, bias, *, max_tile_b=MAX_TILE_B):
    """x: (B, 768), weight: (2, 768), bias: (2,) -> (B, 2) f32."""
    B, D = x.shape
    assert D == IN_FEATURES
    assert weight.shape == (OUT_FEATURES, IN_FEATURES)
    assert bias.shape == (OUT_FEATURES,)

    # bf16 activations/weights, f32 accumulation (pass bf16 x through untouched).
    x_bf = x if x.dtype == jnp.bfloat16 else x.astype(jnp.bfloat16)

    # One-time transpose + zero-pad of the PyTorch (out, in) weight to (K, N)=(768, 128).
    w_t = (
        jnp.zeros((IN_FEATURES, PADDED_OUT), jnp.bfloat16)
        .at[:, :OUT_FEATURES]
        .set(weight.astype(jnp.bfloat16).T)
    )
    b_row = bias.astype(jnp.float32).reshape(1, OUT_FEATURES)

    # ---- batch tiling -------------------------------------------------------
    # tile_b: multiple of 8 (sublane rule), <= max_tile_b, and chosen so that
    # there are >= 2 (ideally 4) grid steps when B allows it (v7x megacore +
    # pipeline overlap).  Ragged last tiles are handled by Pallas block masking,
    # so no HBM-materializing jnp.pad of x is needed.
    max_tile_b = max(8, (max_tile_b // 8) * 8)
    if B >= 64:
        min_tiles = 4
    elif B >= 16:
        min_tiles = 2
    else:
        min_tiles = 1
    n_tiles = max(pl.cdiv(B, max_tile_b), min_tiles)
    tile_b = min(max_tile_b, _round_up(pl.cdiv(B, n_tiles), 8))
    grid_b = pl.cdiv(B, tile_b)

    cost = pl.CostEstimate(
        flops=2 * B * IN_FEATURES * PADDED_OUT,
        transcendentals=0,
        bytes_accessed=(
            B * IN_FEATURES * 2              # read x (bf16)
            + B * OUT_FEATURES * 4           # write out (f32, 2 lanes)
            + IN_FEATURES * PADDED_OUT * 2   # read padded/transposed weight (bf16)
            + OUT_FEATURES * 4               # read bias
        ),
    )

    return pl.pallas_call(
        _linear_kernel,
        out_shape=jax.ShapeDtypeStruct((B, OUT_FEATURES), jnp.float32),
        grid_spec=pltpu.PrefetchScalarGridSpec(
            num_scalar_prefetch=0,
            grid=(grid_b,),
            in_specs=[
                pl.BlockSpec((tile_b, IN_FEATURES), lambda i: (i, 0)),       # x tile (pipelined)
                pl.BlockSpec((IN_FEATURES, PADDED_OUT), lambda i: (0, 0)),   # resident W^T
                pl.BlockSpec((1, OUT_FEATURES), lambda i: (0, 0)),           # resident bias
            ],
            out_specs=pl.BlockSpec((tile_b, OUT_FEATURES), lambda i: (i, 0)),
        ),
        compiler_params=pltpu.CompilerParams(
            # Batch tiles are independent -> shard across v7x's two TensorCores.
            dimension_semantics=("parallel",),
        ),
        cost_estimate=cost,
    )(x_bf, w_t, b_row)


if __name__ == "__main__":
    key = jax.random.PRNGKey(0)
    kx, kw, kb = jax.random.split(key, 3)

    # Deterministic params mimicking nn.Linear's uniform(-1/sqrt(fan_in), 1/sqrt(fan_in)).
    bound = 1.0 / (IN_FEATURES ** 0.5)
    weight = jax.random.uniform(
        kw, (OUT_FEATURES, IN_FEATURES), jnp.float32, minval=-bound, maxval=bound
    )
    bias = jax.random.uniform(
        kb, (OUT_FEATURES,), jnp.float32, minval=-bound, maxval=bound
    )

    # B=2: single (ragged) tile.  B=20: two grid steps with a ragged last tile,
    # exercising masked OOB handling without any wrapper-side padding.
    for B in (2, 20):
        x = jax.random.normal(jax.random.fold_in(kx, B), (B, IN_FEATURES), jnp.float32)
        out = jax.block_until_ready(classifier_forward(x, weight, bias))
        assert out.shape == (B, OUT_FEATURES)

        # Tight check against a bf16-input / f32-accumulate reference (same math as kernel).
        xq = x.astype(jnp.bfloat16).astype(jnp.float32)
        wq = weight.astype(jnp.bfloat16).astype(jnp.float32)
        ref_bf16 = xq @ wq.T + bias
        assert jnp.allclose(out, ref_bf16, atol=1e-3, rtol=1e-3)

        # Loose check against the exact f32 PyTorch-equivalent forward.
        ref_f32 = x @ weight.T + bias
        assert jnp.allclose(out, ref_f32, atol=1e-1, rtol=1e-1)

    print("KERNEL_OK")
</pallas_src>

<mosaic_0001>
module attributes {stable_mosaic.version = 11 : i64} {
  func.func @_linear_kernel(%arg0: i32, %arg1: memref<8x768xbf16, #tpu.memory_space<vmem>>, %arg2: memref<768x128xbf16, #tpu.memory_space<vmem>>, %arg3: memref<1x2xf32, #tpu.memory_space<vmem>>, %arg4: memref<8x2xf32, #tpu.memory_space<vmem>>) attributes {dimension_semantics = [#tpu.dimension_semantics<parallel>], iteration_bounds = array<i64: 1>, scalar_prefetch = 0 : i64, scratch_operands = 0 : i64, tpu.core_type = #tpu.core_type<tc>, window_params = [{transform_indices = @transform_0, window_bounds = array<i64: 8, 768>}, {pipeline_mode = #tpu.pipeline_mode<synchronous>, transform_indices = @transform_1, window_bounds = array<i64: 768, 128>}, {pipeline_mode = #tpu.pipeline_mode<synchronous>, transform_indices = @transform_2, window_bounds = array<i64: 1, 2>}, {transform_indices = @transform_3, window_bounds = array<i64: 8, 2>}]} {
    %c0 = arith.constant 0 : index
    %c0_0 = arith.constant 0 : index
    %0 = vector.load %arg1[%c0, %c0_0] : memref<8x768xbf16, #tpu.memory_space<vmem>>, vector<8x768xbf16>
    %c0_1 = arith.constant 0 : index
    %c0_2 = arith.constant 0 : index
    %1 = vector.load %arg2[%c0_1, %c0_2] : memref<768x128xbf16, #tpu.memory_space<vmem>>, vector<768x128xbf16>
    %cst = arith.constant dense<0.000000e+00> : vector<8x128xf32>
    %2 = tpu.matmul %0, %1, %cst {dimension_numbers = #tpu.dot_dimension_numbers<[1], [0], [0], [1], [0, 0, 1, 1], [], []>} : vector<8x768xbf16>, vector<768x128xbf16>, vector<8x128xf32> -> vector<8x128xf32>
    %3 = vector.extract_strided_slice %2 {offsets = [0, 0], sizes = [8, 2], strides = [1, 1]} : vector<8x128xf32> to vector<8x2xf32>
    %c0_3 = arith.constant 0 : index
    %c0_4 = arith.constant 0 : index
    %4 = vector.load %arg3[%c0_3, %c0_4] : memref<1x2xf32, #tpu.memory_space<vmem>>, vector<1x2xf32>
    %5 = vector.broadcast %4 : vector<1x2xf32> to vector<8x2xf32>
    %6 = arith.addf %3, %5 : vector<8x2xf32>
    %c0_5 = arith.constant 0 : index
    %c0_6 = arith.constant 0 : index
    %7 = vector.load %arg4[%c0_5, %c0_6] : memref<8x2xf32, #tpu.memory_space<vmem>>, vector<8x2xf32>
    tpu.vector_store %arg4[%c0_5, %c0_6], %6 {strides = array<i32>} : memref<8x2xf32, #tpu.memory_space<vmem>>, vector<8x2xf32>,
    return
  }
  func.func @transform_0(%arg0: i32) -> (i32, i32) {
    %c0_i32 = arith.constant 0 : i32
    %c0_i32_0 = arith.constant 0 : i32
    return %arg0, %c0_i32 : i32, i32
  }
  func.func @transform_1(%arg0: i32) -> (i32, i32) {
    %c0_i32 = arith.constant 0 : i32
    %c0_i32_0 = arith.constant 0 : i32
    %c0_i32_1 = arith.constant 0 : i32
    return %c0_i32, %c0_i32_0 : i32, i32
  }
  func.func @transform_2(%arg0: i32) -> (i32, i32) {
    %c0_i32 = arith.constant 0 : i32
    %c0_i32_0 = arith.constant 0 : i32
    %c0_i32_1 = arith.constant 0 : i32
    return %c0_i32, %c0_i32_0 : i32, i32
  }
  func.func @transform_3(%arg0: i32) -> (i32, i32) {
    %c0_i32 = arith.constant 0 : i32
    %c0_i32_0 = arith.constant 0 : i32
    return %arg0, %c0_i32 : i32, i32
  }
}

</mosaic_0001>

<llo_original>
// kernel: classifier_forward.1
$region0: #{classifier_forward.1}
  #allocation0 [shape = 'u32[]', space=smem, size = 0x4, offset = 0x4, fixed_abs, tag = 'smem constant byte address 0x4 - core index']
  #allocation1 [shape = 'u32[144,128]{1,0:T(1,128)}', space=vmem, size = 0x12000, scoped, tag = 'internal scratch']
  %s0 = inlined_call_operand.vmem [shape: bf16[2,768], index: 0, kind: input, shape index: {}]
  %s1 = inlined_call_operand.vmem [shape: bf16[768,128], index: 1, kind: input, shape index: {}]
  %s2 = inlined_call_operand.vmem [shape: f32[1,2], index: 2, kind: input, shape index: {}]
  %s3 = inlined_call_operand.hbm [shape: f32[2,2], index: 3, kind: output, shape index: {}]
  %s4 = sld [smem:[#allocation0]]
  $region22: #{classifier_forward.1} parent=0
    _
  %s6 = ssub.s32 1, %s4
  %s7 = scalar_select 0, %s6, %s4
  $region1: #{classifier_forward.1} parent=0
    #allocation2 [shape = 'u8[4096]{0}', space=vmem, size = 0x1000, scoped, tag = 'output window, operand 0, single buffered']
    #allocation3 [shape = 's32[1]{0}', space=sflag, size = 0x4, scoped, tag = 'scoped memory for classifier_forward.1']
    %8 = vsyncpa [#allocation3], 0
    // Predicated region
    $region2: #{classifier_forward.1} parent=1 // pred_check
      _
    $region3: #{classifier_forward.1} parent=1 // pred_check_branch
      %10 = sbr.rel (0) target = $region5
    $region4: #{classifier_forward.1} parent=1 // pred_region
      _
    $region5: #{classifier_forward.1} parent=1 // pred_fallthru
      _
    // Predicated region
    $region6: #{classifier_forward.1} parent=1 // pred_check
      _
    $region7: #{classifier_forward.1} parent=1 // pred_check_branch
      %12 = sbr.rel (0) target = $region9
    $region8: #{classifier_forward.1} parent=1 // pred_region
      _
    $region9: #{classifier_forward.1} parent=1 // pred_fallthru
      _
    // Predicated region
    $region10: #{classifier_forward.1} parent=1 // pred_check
      _
    $region11: #{classifier_forward.1} parent=1 // pred_check_branch
      %14 = sbr.rel (0) target = $region13
    $region12: #{classifier_forward.1} parent=1 // pred_region
      _
    $region13: #{classifier_forward.1} parent=1 // pred_fallthru
      _
    %v16 = vld [vmem:[%s0] sm:$0x3f]
    %v17 = vld [vmem:[%s0 + $0x6] sm:$0x3f]
    %v18 = vld [vmem:[%s0 + $0xc] sm:$0x3f]
    %v19 = vld [vmem:[%s0 + $0x12] sm:$0x3f]
    %v20 = vld [vmem:[%s1] sm:$0xf]
    %v21 = vld [vmem:[%s1 + $0x4] sm:$0xf]
    %v22 = vld [vmem:[%s1 + $0x8] sm:$0xf]
    %v23 = vld [vmem:[%s1 + $0xc] sm:$0xf]
    %v24 = vld [vmem:[%s1 + $0x10] sm:$0xf]
    %v25 = vld [vmem:[%s1 + $0x14] sm:$0xf]
    %v26 = vld [vmem:[%s1 + $0x18] sm:$0xf]
    %v27 = vld [vmem:[%s1 + $0x1c] sm:$0xf]
    %v28 = vld [vmem:[%s1 + $0x20] sm:$0xf]
    %v29 = vld [vmem:[%s1 + $0x24] sm:$0xf]
    %v30 = vld [vmem:[%s1 + $0x28] sm:$0xf]
    %v31 = vld [vmem:[%s1 + $0x2c] sm:$0xf]
    %v32 = vld [vmem:[%s1 + $0x30] sm:$0xf]
    %v33 = vld [vmem:[%s1 + $0x34] sm:$0xf]
    %v34 = vld [vmem:[%s1 + $0x38] sm:$0xf]
    %v35 = vld [vmem:[%s1 + $0x3c] sm:$0xf]
    %v36 = vld [vmem:[%s1 + $0x40] sm:$0xf]
    %v37 = vld [vmem:[%s1 + $0x44] sm:$0xf]
    %v38 = vld [vmem:[%s1 + $0x48] sm:$0xf]
    %v39 = vld [vmem:[%s1 + $0x4c] sm:$0xf]
    %v40 = vld [vmem:[%s1 + $0x50] sm:$0xf]
    %v41 = vld [vmem:[%s1 + $0x54] sm:$0xf]
    %v42 = vld [vmem:[%s1 + $0x58] sm:$0xf]
    %v43 = vld [vmem:[%s1 + $0x5c] sm:$0xf]
    %v44 = vld [vmem:[%s1 + $0x60] sm:$0xf]
    %v45 = vld [vmem:[%s1 + $0x64] sm:$0xf]
    %v46 = vld [vmem:[%s1 + $0x68] sm:$0xf]
    %v47 = vld [vmem:[%s1 + $0x6c] sm:$0xf]
    %v48 = vld [vmem:[%s1 + $0x70] sm:$0xf]
    %v49 = vld [vmem:[%s1 + $0x74] sm:$0xf]
    %v50 = vld [vmem:[%s1 + $0x78] sm:$0xf]
    %v51 = vld [vmem:[%s1 + $0x7c] sm:$0xf]
    %v52 = vld [vmem:[%s1 + $0x80] sm:$0xf]
    %v53 = vld [vmem:[%s1 + $0x84] sm:$0xf]
    %v54 = vld [vmem:[%s1 + $0x88] sm:$0xf]
    %v55 = vld [vmem:[%s1 + $0x8c] sm:$0xf]
    %v56 = vld [vmem:[%s1 + $0x90] sm:$0xf]
    %v57 = vld [vmem:[%s1 + $0x94] sm:$0xf]
    %v58 = vld [vmem:[%s1 + $0x98] sm:$0xf]
    %v59 = vld [vmem:[%s1 + $0x9c] sm:$0xf]
    %v60 = vld [vmem:[%s1 + $0xa0] sm:$0xf]
    %v61 = vld [vmem:[%s1 + $0xa4] sm:$0xf]
    %v62 = vld [vmem:[%s1 + $0xa8] sm:$0xf]
    %v63 = vld [vmem:[%s1 + $0xac] sm:$0xf]
    %v64 = vld [vmem:[%s1 + $0xb0] sm:$0xf]
    %v65 = vld [vmem:[%s1 + $0xb4] sm:$0xf]
    %v66 = vld [vmem:[%s1 + $0xb8] sm:$0xf]
    %v67 = vld [vmem:[%s1 + $0xbc] sm:$0xf]
    %v68 = vld [vmem:[%s1 + $0xc0] sm:$0xf]
    %v69 = vld [vmem:[%s1 + $0xc4] sm:$0xf]
    %v70 = vld [vmem:[%s1 + $0xc8] sm:$0xf]
    %v71 = vld [vmem:[%s1 + $0xcc] sm:$0xf]
    %v72 = vld [vmem:[%s1 + $0xd0] sm:$0xf]
    %v73 = vld [vmem:[%s1 + $0xd4] sm:$0xf]
    %v74 = vld [vmem:[%s1 + $0xd8] sm:$0xf]
    %v75 = vld [vmem:[%s1 + $0xdc] sm:$0xf]
    %v76 = vld [vmem:[%s1 + $0xe0] sm:$0xf]
    %v77 = vld [vmem:[%s1 + $0xe4] sm:$0xf]
    %v78 = vld [vmem:[%s1 + $0xe8] sm:$0xf]
    %v79 = vld [vmem:[%s1 + $0xec] sm:$0xf]
    %v80 = vld [vmem:[%s1 + $0xf0] sm:$0xf]
    %v81 = vld [vmem:[%s1 + $0xf4] sm:$0xf]
    %v82 = vld [vmem:[%s1 + $0xf8] sm:$0xf]
    %v83 = vld [vmem:[%s1 + $0xfc] sm:$0xf]
    %v84 = vld [vmem:[%s1 + $0x100] sm:$0xf]
    %v85 = vld [vmem:[%s1 + $0x104] sm:$0xf]
    %v86 = vld [vmem:[%s1 + $0x108] sm:$0xf]
    %v87 = vld [vmem:[%s1 + $0x10c] sm:$0xf]
    %v88 = vld [vmem:[%s1 + $0x110] sm:$0xf]
    %v89 = vld [vmem:[%s1 + $0x114] sm:$0xf]
    %v90 = vld [vmem:[%s1 + $0x118] sm:$0xf]
    %v91 = vld [vmem:[%s1 + $0x11c] sm:$0xf]
    %v92 = vld [vmem:[%s1 + $0x120] sm:$0xf]
    %v93 = vld [vmem:[%s1 + $0x124] sm:$0xf]
    %v94 = vld [vmem:[%s1 + $0x128] sm:$0xf]
    %v95 = vld [vmem:[%s1 + $0x12c] sm:$0xf]
    %v96 = vld [vmem:[%s1 + $0x130] sm:$0xf]
    %v97 = vld [vmem:[%s1 + $0x134] sm:$0xf]
    %v98 = vld [vmem:[%s1 + $0x138] sm:$0xf]
    %v99 = vld [vmem:[%s1 + $0x13c] sm:$0xf]
    %v100 = vld [vmem:[%s1 + $0x140] sm:$0xf]
    %v101 = vld [vmem:[%s1 + $0x144] sm:$0xf]
    %v102 = vld [vmem:[%s1 + $0x148] sm:$0xf]
    %v103 = vld [vmem:[%s1 + $0x14c] sm:$0xf]
    %v104 = vld [vmem:[%s1 + $0x150] sm:$0xf]
    %v105 = vld [vmem:[%s1 + $0x154] sm:$0xf]
    %v106 = vld [vmem:[%s1 + $0x158] sm:$0xf]
    %v107 = vld [vmem:[%s1 + $0x15c] sm:$0xf]
    %v108 = vld [vmem:[%s1 + $0x160] sm:$0xf]
    %v109 = vld [vmem:[%s1 + $0x164] sm:$0xf]
    %v110 = vld [vmem:[%s1 + $0x168] sm:$0xf]
    %v111 = vld [vmem:[%s1 + $0x16c] sm:$0xf]
    %v112 = vld [vmem:[%s1 + $0x170] sm:$0xf]
    %v113 = vld [vmem:[%s1 + $0x174] sm:$0xf]
    %v114 = vld [vmem:[%s1 + $0x178] sm:$0xf]
    %v115 = vld [vmem:[%s1 + $0x17c] sm:$0xf]
    %v120 = vcombine.low %v16, %v17
    %v121 = vcombine.high %v16, %v17
    %v122 = vcombine.low %v18, %v19
    %v123 = vcombine.high %v18, %v19
    %v125 = vunpack.c.l.s4 1966171168
    %v126 = vunpack.c.0.s8 %v125
    %v127 = vlaneseq
    %v128 = vshrl.u32 %v127, 7
    %v129 = vsub.s32 %v126, %v128
    %v130 = vrot.slane %v120, %v129
    %v132 = vunpack.c.l.s4 1966171168
    %v133 = vunpack.c.0.s8 %v132
    %v134 = vlaneseq
    %v135 = vshrl.u32 %v134, 7
    %v136 = vsub.s32 %v133, %v135
    %v137 = vrot.slane %v121, %v136
    %v139 = vunpack.c.l.s4 1966171168
    %v140 = vunpack.c.0.s8 %v139
    %v141 = vlaneseq
    %v142 = vshrl.u32 %v141, 7
    %v143 = vsub.s32 %v140, %v142
    %v144 = vrot.slane %v122, %v143
    %v146 = vunpack.c.l.s4 1966171168
    %v147 = vunpack.c.0.s8 %v146
    %v148 = vlaneseq
    %v149 = vshrl.u32 %v148, 7
    %v150 = vsub.s32 %v147, %v149
    %v151 = vrot.slane %v123, %v150
    %v152 = vcombine.low %v130, %v144
    %v153 = vcombine.high %v130, %v144
    %v154 = vcombine.low %v137, %v151
    %v155 = vcombine.high %v137, %v151
    %v157 = vunpack.c.l.s4 1966171168
    %v158 = vunpack.c.0.s8 %v157
    %v159 = vlaneseq
    %v160 = vshrl.u32 %v159, 7
    %v161 = vsub.s32 %v158, %v160
    %v162 = vrot.slane %v152, %v161
    %v164 = vunpack.c.l.s4 1966171168
    %v165 = vunpack.c.0.s8 %v164
    %v166 = vlaneseq
    %v167 = vshrl.u32 %v166, 7
    %v168 = vsub.s32 %v165, %v167
    %v169 = vrot.slane %v154, %v168
    %v171 = vunpack.c.l.s4 1966171168
    %v172 = vunpack.c.0.s8 %v171
    %v173 = vlaneseq
    %v174 = vshrl.u32 %v173, 7
    %v175 = vsub.s32 %v172, %v174
    %v176 = vrot.slane %v153, %v175
    %v178 = vunpack.c.l.s4 1966171168
    %v179 = vunpack.c.0.s8 %v178
    %v180 = vlaneseq
    %v181 = vshrl.u32 %v180, 7
    %v182 = vsub.s32 %v179, %v181
    %v183 = vrot.slane %v155, %v182
    %v184 = vcombine.high %v162, %v162
    %v185 = vcombine.high %v176, %v176
    %v288 = vunpack.c.l.b16 %v20
    %v289 = vunpack.c.l.b16 %v21
    %v290 = vunpack.c.l.b16 %v22
    %v291 = vunpack.c.l.b16 %v23
    %v292 = vunpack.c.l.b16 %v24
    %v293 = vunpack.c.l.b16 %v25
    %v294 = vunpack.c.l.b16 %v26
    %v295 = vunpack.c.l.b16 %v27
    %v296 = vunpack.c.l.b16 %v28
    %v297 = vunpack.c.l.b16 %v29
    %v298 = vunpack.c.l.b16 %v30
    %v299 = vunpack.c.l.b16 %v31
    %v300 = vunpack.c.l.b16 %v32
    %v301 = vunpack.c.l.b16 %v33
    %v302 = vunpack.c.l.b16 %v34
    %v303 = vunpack.c.l.b16 %v35
    %v304 = vunpack.c.l.b16 %v36
    %v305 = vunpack.c.l.b16 %v37
    %v306 = vunpack.c.l.b16 %v38
    %v307 = vunpack.c.l.b16 %v39
    %v308 = vunpack.c.l.b16 %v40
    %v309 = vunpack.c.l.b16 %v41
    %v310 = vunpack.c.l.b16 %v42
    %v311 = vunpack.c.l.b16 %v43
    %v312 = vunpack.c.l.b16 %v44
    %v313 = vunpack.c.l.b16 %v45
    %v314 = vunpack.c.l.b16 %v46
    %v315 = vunpack.c.l.b16 %v47
    %v316 = vunpack.c.l.b16 %v48
    %v317 = vunpack.c.l.b16 %v49
    %v318 = vunpack.c.l.b16 %v50
    %v319 = vunpack.c.l.b16 %v51
    %v320 = vunpack.c.l.b16 %v52
    %v321 = vunpack.c.l.b16 %v53
    %v322 = vunpack.c.l.b16 %v54
    %v323 = vunpack.c.l.b16 %v55
    %v324 = vunpack.c.l.b16 %v56
    %v325 = vunpack.c.l.b16 %v57
    %v326 = vunpack.c.l.b16 %v58
    %v327 = vunpack.c.l.b16 %v59
    %v328 = vunpack.c.l.b16 %v60
    %v329 = vunpack.c.l.b16 %v61
    %v330 = vunpack.c.l.b16 %v62
    %v331 = vunpack.c.l.b16 %v63
    %v332 = vunpack.c.l.b16 %v64
    %v333 = vunpack.c.l.b16 %v65
    %v334 = vunpack.c.l.b16 %v66
    %v335 = vunpack.c.l.b16 %v67
    %v336 = vunpack.c.l.b16 %v68
    %v337 = vunpack.c.l.b16 %v69
    %v338 = vunpack.c.l.b16 %v70
    %v339 = vunpack.c.l.b16 %v71
    %v340 = vunpack.c.l.b16 %v72
    %v341 = vunpack.c.l.b16 %v73
    %v342 = vunpack.c.l.b16 %v74
    %v343 = vunpack.c.l.b16 %v75
    %v344 = vunpack.c.l.b16 %v76
    %v345 = vunpack.c.l.b16 %v77
    %v346 = vunpack.c.l.b16 %v78
    %v347 = vunpack.c.l.b16 %v79
    %v348 = vunpack.c.l.b16 %v80
    %v349 = vunpack.c.l.b16 %v81
    %v350 = vunpack.c.l.b16 %v82
    %v351 = vunpack.c.l.b16 %v83
    %v352 = vunpack.c.l.b16 %v84
    %v353 = vunpack.c.l.b16 %v85
    %v354 = vunpack.c.l.b16 %v86
    %v355 = vunpack.c.l.b16 %v87
    %v356 = vunpack.c.l.b16 %v88
    %v357 = vunpack.c.l.b16 %v89
    %v358 = vunpack.c.l.b16 %v90
    %v359 = vunpack.c.l.b16 %v91
    %v360 = vunpack.c.l.b16 %v92
    %v361 = vunpack.c.l.b16 %v93
    %v362 = vunpack.c.l.b16 %v94
    %v363 = vunpack.c.l.b16 %v95
    %v364 = vunpack.c.l.b16 %v96
    %v365 = vunpack.c.l.b16 %v97
    %v366 = vunpack.c.l.b16 %v98
    %v367 = vunpack.c.l.b16 %v99
    %v368 = vunpack.c.l.b16 %v100
    %v369 = vunpack.c.l.b16 %v101
    %v370 = vunpack.c.l.b16 %v102
    %v371 = vunpack.c.l.b16 %v103
    %v372 = vunpack.c.l.b16 %v104
    %v373 = vunpack.c.l.b16 %v105
    %v374 = vunpack.c.l.b16 %v106
    %v375 = vunpack.c.l.b16 %v107
    %v376 = vunpack.c.l.b16 %v108
    %v377 = vunpack.c.l.b16 %v109
    %v378 = vunpack.c.l.b16 %v110
    %v379 = vunpack.c.l.b16 %v111
    %v380 = vunpack.c.l.b16 %v112
    %v381 = vunpack.c.l.b16 %v113
    %v382 = vunpack.c.l.b16 %v114
    %v383 = vunpack.c.l.b16 %v115
    %v384 = vpack.c.b16 %v289, %v288
    %v385 = vpack.c.b16 %v291, %v290
    %v386 = vpack.c.b16 %v293, %v292
    %v387 = vpack.c.b16 %v295, %v294
    %v388 = vpack.c.b16 %v297, %v296
    %v389 = vpack.c.b16 %v299, %v298
    %v390 = vpack.c.b16 %v301, %v300
    %v391 = vpack.c.b16 %v303, %v302
    %v392 = vpack.c.b16 %v305, %v304
    %v393 = vpack.c.b16 %v307, %v306
    %v394 = vpack.c.b16 %v309, %v308
    %v395 = vpack.c.b16 %v311, %v310
    %v396 = vpack.c.b16 %v313, %v312
    %v397 = vpack.c.b16 %v315, %v314
    %v398 = vpack.c.b16 %v317, %v316
    %v399 = vpack.c.b16 %v319, %v318
    %v400 = vpack.c.b16 %v321, %v320
    %v401 = vpack.c.b16 %v323, %v322
    %v402 = vpack.c.b16 %v325, %v324
    %v403 = vpack.c.b16 %v327, %v326
    %v404 = vpack.c.b16 %v329, %v328
    %v405 = vpack.c.b16 %v331, %v330
    %v406 = vpack.c.b16 %v333, %v332
    %v407 = vpack.c.b16 %v335, %v334
    %v408 = vpack.c.b16 %v337, %v336
    %v409 = vpack.c.b16 %v339, %v338
    %v410 = vpack.c.b16 %v341, %v340
    %v411 = vpack.c.b16 %v343, %v342
    %v412 = vpack.c.b16 %v345, %v344
    %v413 = vpack.c.b16 %v347, %v346
    %v414 = vpack.c.b16 %v349, %v348
    %v415 = vpack.c.b16 %v351, %v350
    %v416 = vpack.c.b16 %v353, %v352
    %v417 = vpack.c.b16 %v355, %v354
    %v418 = vpack.c.b16 %v357, %v356
    %v419 = vpack.c.b16 %v359, %v358
    %v420 = vpack.c.b16 %v361, %v360
    %v421 = vpack.c.b16 %v363, %v362
    %v422 = vpack.c.b16 %v365, %v364
    %v423 = vpack.c.b16 %v367, %v366
    %v424 = vpack.c.b16 %v369, %v368
    %v425 = vpack.c.b16 %v371, %v370
    %v426 = vpack.c.b16 %v373, %v372
    %v427 = vpack.c.b16 %v375, %v374
    %v428 = vpack.c.b16 %v377, %v376
    %v429 = vpack.c.b16 %v379, %v378
    %v430 = vpack.c.b16 %v381, %v380
    %v431 = vpack.c.b16 %v383, %v382
    %480 = vmatprep.subr.bf16.mxu0 0
    %481 = vmatpush1.bf16.msra.mxu0 %v391
    %482 = vmatprep.subr.bf16.mxu0 0
    %483 = vmatpush1.bf16.msra.mxu0 %v390
    %484 = vmatprep.subr.bf16.mxu0 0
    %485 = vmatpush1.bf16.msra.mxu0 %v389
    %486 = vmatprep.subr.bf16.mxu0 0
    %487 = vmatpush1.bf16.msra.mxu0 %v388
    %488 = vmatprep.subr.bf16.mxu0 0
    %489 = vmatpush1.bf16.msra.mxu0 %v387
    %490 = vmatprep.subr.bf16.mxu0 0
    %491 = vmatpush1.bf16.msra.mxu0 %v386
    %492 = vmatprep.subr.bf16.mxu0 0
    %493 = vmatpush1.bf16.msra.mxu0 %v385
    %494 = vmatprep.subr.bf16.mxu0 0
    %495 = vmatpush1.bf16.msra.mxu0 %v384
    %496 = vmatprep.subr.bf16.mxu0 0
    %497 = vmatpush2.bf16.msra.mxu0 %v399
    %498 = vmatprep.subr.bf16.mxu0 0
    %499 = vmatpush2.bf16.msra.mxu0 %v398
    %500 = vmatprep.subr.bf16.mxu0 0
    %501 = vmatpush2.bf16.msra.mxu0 %v397
    %502 = vmatprep.subr.bf16.mxu0 0
    %503 = vmatpush2.bf16.msra.mxu0 %v396
    %504 = vmatprep.subr.bf16.mxu0 0
    %505 = vmatpush2.bf16.msra.mxu0 %v395
    %506 = vmatprep.subr.bf16.mxu0 0
    %507 = vmatpush2.bf16.msra.mxu0 %v394
    %508 = vmatprep.subr.bf16.mxu0 0
    %509 = vmatpush2.bf16.msra.mxu0 %v393
    %510 = vmatprep.subr.bf16.mxu0 0
    %511 = vmatpush2.bf16.msra.mxu0 %v392
    %512 = vmatprep.mubr.bf16.mxu0 %v176
    %513 = vmatmul.mubr.bf16.gmra.mxu0 %v162
    %v514 = vpop.f32.mrf.mxu0
    %v515 = vadd.f32 0.0, %v514
    %v516 = vpop.f32.mrf.mxu0
    %v517 = vpop.f32.mrf.mxu0
    %v518 = vpop.f32.mrf.mxu0
    %519 = vdwg.mxu0
    %520 = vmatprep.subr.bf16.mxu0 0
    %521 = vmatpush1.bf16.msra.mxu0 %v407
    %522 = vmatprep.subr.bf16.mxu0 0
    %523 = vmatpush1.bf16.msra.mxu0 %v406
    %524 = vmatprep.subr.bf16.mxu0 0
    %525 = vmatpush1.bf16.msra.mxu0 %v405
    %526 = vmatprep.subr.bf16.mxu0 0
    %527 = vmatpush1.bf16.msra.mxu0 %v404
    %528 = vmatprep.subr.bf16.mxu0 0
    %529 = vmatpush1.bf16.msra.mxu0 %v403
    %530 = vmatprep.subr.bf16.mxu0 0
    %531 = vmatpush1.bf16.msra.mxu0 %v402
    %532 = vmatprep.subr.bf16.mxu0 0
    %533 = vmatpush1.bf16.msra.mxu0 %v401
    %534 = vmatprep.subr.bf16.mxu0 0
    %535 = vmatpush1.bf16.msra.mxu0 %v400
    %536 = vmatprep.subr.bf16.mxu0 0
    %537 = vmatpush2.bf16.msra.mxu0 %v415
    %538 = vmatprep.subr.bf16.mxu0 0
    %539 = vmatpush2.bf16.msra.mxu0 %v414
    %540 = vmatprep.subr.bf16.mxu0 0
    %541 = vmatpush2.bf16.msra.mxu0 %v413
    %542 = vmatprep.subr.bf16.mxu0 0
    %543 = vmatpush2.bf16.msra.mxu0 %v412
    %544 = vmatprep.subr.bf16.mxu0 0
    %545 = vmatpush2.bf16.msra.mxu0 %v411
    %546 = vmatprep.subr.bf16.mxu0 0
    %547 = vmatpush2.bf16.msra.mxu0 %v410
    %548 = vmatprep.subr.bf16.mxu0 0
    %549 = vmatpush2.bf16.msra.mxu0 %v409
    %550 = vmatprep.subr.bf16.mxu0 0
    %551 = vmatpush2.bf16.msra.mxu0 %v408
    %552 = vmatprep.mubr.bf16.mxu0 %v185
    %553 = vmatmul.mubr.bf16.gmra.mxu0 %v184
    %v554 = vpop.f32.mrf.mxu0
    %v555 = vadd.f32 %v515, %v554
    %v556 = vpop.f32.mrf.mxu0
    %v557 = vpop.f32.mrf.mxu0
    %v558 = vpop.f32.mrf.mxu0
    %559 = vdwg.mxu0
    %560 = vmatprep.subr.bf16.mxu0 0
    %561 = vmatpush1.bf16.msra.mxu0 %v423
    %562 = vmatprep.subr.bf16.mxu0 0
    %563 = vmatpush1.bf16.msra.mxu0 %v422
    %564 = vmatprep.subr.bf16.mxu0 0
    %565 = vmatpush1.bf16.msra.mxu0 %v421
    %566 = vmatprep.subr.bf16.mxu0 0
    %567 = vmatpush1.bf16.msra.mxu0 %v420
    %568 = vmatprep.subr.bf16.mxu0 0
    %569 = vmatpush1.bf16.msra.mxu0 %v419
    %570 = vmatprep.subr.bf16.mxu0 0
    %571 = vmatpush1.bf16.msra.mxu0 %v418
    %572 = vmatprep.subr.bf16.mxu0 0
    %573 = vmatpush1.bf16.msra.mxu0 %v417
    %574 = vmatprep.subr.bf16.mxu0 0
    %575 = vmatpush1.bf16.msra.mxu0 %v416
    %576 = vmatprep.subr.bf16.mxu0 0
    %577 = vmatpush2.bf16.msra.mxu0 %v431
    %578 = vmatprep.subr.bf16.mxu0 0
    %579 = vmatpush2.bf16.msra.mxu0 %v430
    %580 = vmatprep.subr.bf16.mxu0 0
    %581 = vmatpush2.bf16.msra.mxu0 %v429
    %582 = vmatprep.subr.bf16.mxu0 0
    %583 = vmatpush2.bf16.msra.mxu0 %v428
    %584 = vmatprep.subr.bf16.mxu0 0
    %585 = vmatpush2.bf16.msra.mxu0 %v427
    %586 = vmatprep.subr.bf16.mxu0 0
    %587 = vmatpush2.bf16.msra.mxu0 %v426
    %588 = vmatprep.subr.bf16.mxu0 0
    %589 = vmatpush2.bf16.msra.mxu0 %v425
    %590 = vmatprep.subr.bf16.mxu0 0
    %591 = vmatpush2.bf16.msra.mxu0 %v424
    %592 = vmatprep.mubr.bf16.mxu0 %v183
    %593 = vmatmul.mubr.bf16.gmra.mxu0 %v169
    %v594 = vpop.f32.mrf.mxu0
    %v595 = vadd.f32 %v555, %v594
    %v596 = vpop.f32.mrf.mxu0
    %v597 = vpop.f32.mrf.mxu0
    %v598 = vpop.f32.mrf.mxu0
    %599 = vdwg.mxu0
    %v600 = vld [vmem:[%s2] sm:$0x1]
    %v602 = vlaneseq
    %v603 = vshrl.u32 %v602, 7
    %v604 = vsub.s32 0, %v603
    %v605 = vrot.slane %v600, %v604
    %v607 = vadd.f32 %v595, %v605
    %vm608 = vcmask 15360
    %609 = vst.msk [vmem:[#allocation2] sm:$0xff] %vm608, %v607
    // Predicated region
    $region14: #{classifier_forward.1} parent=1 // pred_check
      _
    $region15: #{classifier_forward.1} parent=1 // pred_check_branch
      %611 = sbr.rel (0) target = $region17
    $region16: #{classifier_forward.1} parent=1 // pred_region
      %s613 = ssub.s32 128, 32
      %614 = vsyncadd [#allocation3], %s613
      %s615 = sshll.u32 [#allocation2], 4
      %s616 = int_to_ptr.vmem [resolvable:$true] %s615
      %621 = dma.vmem_to_hbm [thread:$0]  %s616, 32, %s3, [#allocation3], 32, 32, 2
    $region17: #{classifier_forward.1} parent=1 // pred_fallthru
      _
    // Predicated region
    $region18: #{classifier_forward.1} parent=1 // pred_check
      _
    $region19: #{classifier_forward.1} parent=1 // pred_check_branch
      %623 = sbr.rel (0) target = $region21
    $region20: #{classifier_forward.1} parent=1 // pred_region
      %624 = dma.done [#allocation3], 128
    $region21: #{classifier_forward.1} parent=1 // pred_fallthru
      _
    %625 = vsyncpa [#allocation3], 1

</llo_original>
